<compile_context>
chip_gen: v5e
topology: v5e:2x2
jax: 0.10.0
libtpu: 0.0.40
codegen_flags: <defaults>
</compile_context>

<pallas_src>
import jax
import jax.numpy as jnp
from jax.experimental import pallas as pl
from jax.experimental.pallas import tpu as pltpu

# ---- logical problem sizes (CartPole-style env: 4 states, 2 actions) --------
N_STATES = 4
N_ACTIONS = 2
HIDDEN = 50
BATCH = 8

# ---- padded / packed sizes ---------------------------------------------------
LANES = 128
K_P = 8              # padded input dim: 4 real + 1 constant-1 bias lane + 3 zero
HIDDEN_P = 128       # padded hidden dim: 50 real + 1 bias-carrier unit + 77 zero
OUT_P = 8            # padded action dim of the kernel output (full-array last dim)
BIG_NEG = -1e30      # padded action lanes get this -> raw argmax is safe

# packed parameter slab layout (all rows 128 lanes wide, f32, ~68 KiB):
#   rows [W1_OFF, W1_OFF + K_P)        -> augmented w1:
#       rows 0..3          = w1 (n_states, hidden)   in cols [0, HIDDEN)
#       row  N_STATES (=4) = b1 in cols [0, HIDDEN), and 1.0 at col HIDDEN
#                            (the 1.0 builds the ReLU-passthrough bias carrier)
#       rows 5..7          = 0
#   rows [W2_OFF, W2_OFF + HIDDEN_P)   -> augmented w2:
#       rows 0..49         = w2 (hidden, n_actions)  in cols [0, N_ACTIONS)
#       row  HIDDEN (=50)  = b2 in cols [0, N_ACTIONS)
#       rows 51..127       = 0
W1_OFF = 0
W2_OFF = K_P
PARAM_ROWS = K_P + HIDDEN_P          # 136, already a multiple of 8


def qnet_kernel(x_ref, p_ref, o_ref):
    """Full forward pass for one (tiny) batch tile.

    x_ref : (TM, K_P)             f32  (features, constant-1 bias lane, zeros)
    p_ref : (PARAM_ROWS, LANES)   f32  (packed augmented w1 | augmented w2)
    o_ref : (TM, OUT_P)           f32
    """
    x = x_ref[...]                                    # (TM, 8)
    w1 = p_ref[W1_OFF:W1_OFF + K_P, :]                # (8, 128)   b1 folded in
    w2 = p_ref[W2_OFF:W2_OFF + HIDDEN_P, :]           # (128, 128) b2 folded in

    # fc[0]: Linear(n_states -> hidden) (+b1 via constant-1 lane), fc[1]: ReLU
    h = jnp.maximum(jnp.dot(x, w1, preferred_element_type=jnp.float32), 0.0)
    # fc[2]: Linear(hidden -> n_actions) (+b2 via the ReLU-passthrough unit)
    out = jnp.dot(h, w2, preferred_element_type=jnp.float32)    # (TM, 128)
    out = out[:, :OUT_P]                                        # (TM, 8)

    # Padded action lanes -> large negative, so the raw kernel output is
    # argmax-safe even before the wrapper slice.
    lane = jax.lax.broadcasted_iota(jnp.int32, out.shape, 1)
    o_ref[...] = jnp.where(lane < N_ACTIONS, out, BIG_NEG).astype(o_ref.dtype)


@jax.jit
def q_net_forward(x, packed_params):
    """x: (B, n_states) f32  ->  actions_value: (B, n_actions) f32."""
    B = x.shape[0]
    b_pad = ((B + 7) // 8) * 8                        # static under jit

    # pad batch rows to a multiple of 8, append constant-1 bias lane, zero rest
    x_p = jnp.zeros((b_pad, K_P), jnp.float32)
    x_p = x_p.at[:B, :N_STATES].set(x.astype(jnp.float32))
    x_p = x_p.at[:B, N_STATES].set(1.0)

    out = pl.pallas_call(
        qnet_kernel,
        out_shape=jax.ShapeDtypeStruct((b_pad, OUT_P), jnp.float32),
        grid_spec=pltpu.PrefetchScalarGridSpec(
            num_scalar_prefetch=0,
            grid=(1,),
            in_specs=[
                pl.BlockSpec((b_pad, K_P), lambda i: (0, 0)),
                # same block every grid step -> params DMA'd once, resident
                pl.BlockSpec((PARAM_ROWS, LANES), lambda i: (0, 0)),
            ],
            out_specs=pl.BlockSpec((b_pad, OUT_P), lambda i: (0, 0)),
        ),
        compiler_params=pltpu.CompilerParams(
            dimension_semantics=("arbitrary",)),
    )(x_p, packed_params)

    # real Q-values; padded rows / action lanes are discarded here
    return out[:B, :N_ACTIONS]


def init_params(key, n_states=N_STATES, hidden=HIDDEN, n_actions=N_ACTIONS):
    """Matches the PyTorch module's init:
       - weights: normal(std=0.1)   (nn.init.normal on fc[0].weight, fc[2].weight)
       - biases : PyTorch Linear default uniform(-1/sqrt(fan_in), 1/sqrt(fan_in))
    Weights are returned as (in, out), i.e. PyTorch W.T (true, unpadded sizes).
    """
    k1, k2, k3, k4 = jax.random.split(key, 4)
    w1 = 0.1 * jax.random.normal(k1, (n_states, hidden), dtype=jnp.float32)
    bound1 = 1.0 / jnp.sqrt(jnp.float32(n_states))
    b1 = jax.random.uniform(k2, (hidden,), minval=-bound1, maxval=bound1,
                            dtype=jnp.float32)
    w2 = 0.1 * jax.random.normal(k3, (hidden, n_actions), dtype=jnp.float32)
    bound2 = 1.0 / jnp.sqrt(jnp.float32(hidden))
    b2 = jax.random.uniform(k4, (n_actions,), minval=-bound2, maxval=bound2,
                            dtype=jnp.float32)
    return w1, b1, w2, b2


def pack_params(w1, b1, w2, b2):
    """Zero-pad and pack params into one lane-dense (136, 128) slab with the
    biases folded into the weight matrices (see layout comment above)."""
    p = jnp.zeros((PARAM_ROWS, LANES), jnp.float32)
    # augmented w1: real weights + b1 row + bias-carrier 1.0
    p = p.at[W1_OFF:W1_OFF + N_STATES, :HIDDEN].set(w1)
    p = p.at[W1_OFF + N_STATES, :HIDDEN].set(b1)
    p = p.at[W1_OFF + N_STATES, HIDDEN].set(1.0)
    # augmented w2: real weights + b2 row (driven by the constant-1 hidden unit)
    p = p.at[W2_OFF:W2_OFF + HIDDEN, :N_ACTIONS].set(w2)
    p = p.at[W2_OFF + HIDDEN, :N_ACTIONS].set(b2)
    return p


if __name__ == "__main__":
    key = jax.random.PRNGKey(0)
    kx, kp = jax.random.split(key)

    x = jax.random.normal(kx, (BATCH, N_STATES), dtype=jnp.float32)
    w1, b1, w2, b2 = init_params(kp)
    packed = pack_params(w1, b1, w2, b2)

    out = q_net_forward(x, packed)
    out = jax.block_until_ready(out)

    # Reference check in plain JAX (same math, unpadded params, no Pallas).
    ref = jnp.maximum(x @ w1 + b1[None, :], 0.0) @ w2 + b2[None, :]
    assert out.shape == (BATCH, N_ACTIONS)
    assert jnp.allclose(out, ref, atol=1e-5, rtol=1e-5)

    # Latency-critical single-observation act-selection path (B=1).
    out1 = jax.block_until_ready(q_net_forward(x[:1], packed))
    assert out1.shape == (1, N_ACTIONS)
    assert jnp.allclose(out1, ref[:1], atol=1e-5, rtol=1e-5)

    print("KERNEL_OK")
</pallas_src>

<mosaic_0001>
module attributes {stable_mosaic.version = 11 : i64} {
  func.func @qnet_kernel(%arg0: i32, %arg1: memref<8x8xf32, #tpu.memory_space<vmem>>, %arg2: memref<136x128xf32, #tpu.memory_space<vmem>>, %arg3: memref<8x8xf32, #tpu.memory_space<vmem>>) attributes {dimension_semantics = [#tpu.dimension_semantics<arbitrary>], iteration_bounds = array<i64: 1>, scalar_prefetch = 0 : i64, scratch_operands = 0 : i64, tpu.core_type = #tpu.core_type<tc>, window_params = [{pipeline_mode = #tpu.pipeline_mode<synchronous>, transform_indices = @transform_0, window_bounds = array<i64: 8, 8>}, {pipeline_mode = #tpu.pipeline_mode<synchronous>, transform_indices = @transform_1, window_bounds = array<i64: 136, 128>}, {pipeline_mode = #tpu.pipeline_mode<synchronous>, transform_indices = @transform_2, window_bounds = array<i64: 8, 8>}]} {
    %c0 = arith.constant 0 : index
    %c0_0 = arith.constant 0 : index
    %0 = vector.load %arg1[%c0, %c0_0] : memref<8x8xf32, #tpu.memory_space<vmem>>, vector<8x8xf32>
    %c0_1 = arith.constant 0 : index
    %c0_2 = arith.constant 0 : index
    %1 = vector.load %arg2[%c0_1, %c0_2] : memref<136x128xf32, #tpu.memory_space<vmem>>, vector<8x128xf32>
    %c8 = arith.constant 8 : index
    %c0_3 = arith.constant 0 : index
    %2 = vector.load %arg2[%c8, %c0_3] : memref<136x128xf32, #tpu.memory_space<vmem>>, vector<128x128xf32>
    %cst = arith.constant dense<0.000000e+00> : vector<8x128xf32>
    %3 = tpu.matmul %0, %1, %cst {dimension_numbers = #tpu.dot_dimension_numbers<[1], [0], [0], [1], [0, 0, 1, 1], [], []>} : vector<8x8xf32>, vector<8x128xf32>, vector<8x128xf32> -> vector<8x128xf32>
    %cst_4 = arith.constant 0.000000e+00 : f32
    %4 = vector.broadcast %cst_4 : f32 to vector<8x128xf32>
    %5 = arith.maximumf %3, %4 : vector<8x128xf32>
    %cst_5 = arith.constant dense<0.000000e+00> : vector<8x128xf32>
    %6 = tpu.matmul %5, %2, %cst_5 {dimension_numbers = #tpu.dot_dimension_numbers<[1], [0], [0], [1], [0, 0, 1, 1], [], []>} : vector<8x128xf32>, vector<128x128xf32>, vector<8x128xf32> -> vector<8x128xf32>
    %7 = vector.extract_strided_slice %6 {offsets = [0, 0], sizes = [8, 8], strides = [1, 1]} : vector<8x128xf32> to vector<8x8xf32>
    %8 = tpu.iota {dimensions = array<i32: 1>} : vector<8x8xi32>
    %c2_i32 = arith.constant 2 : i32
    %9 = vector.broadcast %c2_i32 : i32 to vector<8x8xi32>
    %10 = arith.cmpi slt, %8, %9 : vector<8x8xi32>
    %cst_6 = arith.constant -1.000000e+30 : f32
    %11 = vector.broadcast %cst_6 : f32 to vector<8x8xf32>
    %12 = arith.select %10, %7, %11 : vector<8x8xi1>, vector<8x8xf32>
    %c0_7 = arith.constant 0 : index
    %c0_8 = arith.constant 0 : index
    %13 = vector.load %arg3[%c0_7, %c0_8] : memref<8x8xf32, #tpu.memory_space<vmem>>, vector<8x8xf32>
    tpu.vector_store %arg3[%c0_7, %c0_8], %12 {strides = array<i32>} : memref<8x8xf32, #tpu.memory_space<vmem>>, vector<8x8xf32>,
    return
  }
  func.func @transform_0(%arg0: i32) -> (i32, i32) {
    %c0_i32 = arith.constant 0 : i32
    %c0_i32_0 = arith.constant 0 : i32
    %c0_i32_1 = arith.constant 0 : i32
    return %c0_i32, %c0_i32_0 : i32, i32
  }
  func.func @transform_1(%arg0: i32) -> (i32, i32) {
    %c0_i32 = arith.constant 0 : i32
    %c0_i32_0 = arith.constant 0 : i32
    %c0_i32_1 = arith.constant 0 : i32
    return %c0_i32, %c0_i32_0 : i32, i32
  }
  func.func @transform_2(%arg0: i32) -> (i32, i32) {
    %c0_i32 = arith.constant 0 : i32
    %c0_i32_0 = arith.constant 0 : i32
    %c0_i32_1 = arith.constant 0 : i32
    return %c0_i32, %c0_i32_0 : i32, i32
  }
}

</mosaic_0001>

<llo_original>
// kernel: q_net_forward.1
$region0: #{q_net_forward.1}
  #allocation0 [shape = 'u32[]', space=smem, size = 0x4, offset = 0x4, fixed_abs, tag = 'smem constant byte address 0x4 - core index']
  #allocation1 [shape = 'u32[72,128]{1,0:T(1,128)}', space=vmem, size = 0x9000, scoped, tag = 'internal scratch']
  %s0 = inlined_call_operand.vmem [shape: f32[8,8], index: 0, kind: input, shape index: {}]
  %s1 = inlined_call_operand.hbm [shape: f32[136,128], index: 1, kind: input, shape index: {}]
  %s2 = inlined_call_operand.vmem [shape: f32[8,8], index: 2, kind: output, shape index: {}]
  %s3 = sld [smem:[#allocation0]]
  $region22: #{q_net_forward.1} parent=0
    _
  %s5 = ssub.s32 1, %s3
  %s6 = scalar_select 0, %s5, %s3
  $region1: #{q_net_forward.1} parent=0
    #allocation2 [shape = 'u8[69632]{0}', space=vmem, size = 0x11000, scoped, tag = 'input window, operand 1, single buffered']
    #allocation3 [shape = 's32[1]{0}', space=sflag, size = 0x4, scoped, tag = 'scoped memory for q_net_forward.1']
    %7 = vsyncpa [#allocation3], 0
    // Predicated region
    $region2: #{q_net_forward.1} parent=1 // pred_check
      _
    $region3: #{q_net_forward.1} parent=1 // pred_check_branch
      %9 = sbr.rel (0) target = $region5
    $region4: #{q_net_forward.1} parent=1 // pred_region
      _
    $region5: #{q_net_forward.1} parent=1 // pred_fallthru
      _
    // Predicated region
    $region6: #{q_net_forward.1} parent=1 // pred_check
      _
    $region7: #{q_net_forward.1} parent=1 // pred_check_branch
      %11 = sbr.rel (0) target = $region9
    $region8: #{q_net_forward.1} parent=1 // pred_region
      %13 = vsyncadd [#allocation3], 0
      %s14 = sshll.u32 %s1, 4
      %s15 = int_to_ptr.hbm [resolvable:$true] %s14
      %s16 = sshll.u32 [#allocation2], 4
      %s17 = int_to_ptr.vmem [resolvable:$true] %s16
      %22 = dma.hbm_to_vmem [thread:$0]  %s15, 2176, %s17, [#allocation3], 128, 128, 8
    $region9: #{q_net_forward.1} parent=1 // pred_fallthru
      _
    // Predicated region
    $region10: #{q_net_forward.1} parent=1 // pred_check
      _
    $region11: #{q_net_forward.1} parent=1 // pred_check_branch
      %24 = sbr.rel (0) target = $region13
    $region12: #{q_net_forward.1} parent=1 // pred_region
      %26 = dma.done [#allocation3], 2176
    $region13: #{q_net_forward.1} parent=1 // pred_fallthru
      _
    %v27 = vld [vmem:[%s0] sm:$0xff]
    %v28 = vld [vmem:[#allocation2] sm:$0xff]
    %v29 = vld [vmem:[#allocation2 + $0x8] sm:$0xff]
    %v30 = vld [vmem:[#allocation2 + $0x10] sm:$0xff]
    %v31 = vld [vmem:[#allocation2 + $0x18] sm:$0xff]
    %v32 = vld [vmem:[#allocation2 + $0x20] sm:$0xff]
    %v33 = vld [vmem:[#allocation2 + $0x28] sm:$0xff]
    %v34 = vld [vmem:[#allocation2 + $0x30] sm:$0xff]
    %v35 = vld [vmem:[#allocation2 + $0x38] sm:$0xff]
    %v36 = vld [vmem:[#allocation2 + $0x40] sm:$0xff]
    %v37 = vld [vmem:[#allocation2 + $0x48] sm:$0xff]
    %v38 = vld [vmem:[#allocation2 + $0x50] sm:$0xff]
    %v39 = vld [vmem:[#allocation2 + $0x58] sm:$0xff]
    %v40 = vld [vmem:[#allocation2 + $0x60] sm:$0xff]
    %v41 = vld [vmem:[#allocation2 + $0x68] sm:$0xff]
    %v42 = vld [vmem:[#allocation2 + $0x70] sm:$0xff]
    %v43 = vld [vmem:[#allocation2 + $0x78] sm:$0xff]
    %v44 = vld [vmem:[#allocation2 + $0x80] sm:$0xff]
    %vm45 = vcmask 64512
    %v47 = vsel %vm45, %v27, 0
    %49 = vmatpush.msra.mxu0 0.0
    %50 = vmatpush.msra.mxu0 0.0
    %51 = vmatpush.msra.mxu0 0.0
    %52 = vmatpush.msra.mxu0 0.0
    %53 = vmatpush.msra.mxu0 0.0
    %54 = vmatpush.msra.mxu0 0.0
    %55 = vmatpush.msra.mxu0 0.0
    %56 = vmatpush.msra.mxu0 0.0
    %57 = vmatpush.msra.mxu0 0.0
    %58 = vmatpush.msra.mxu0 0.0
    %59 = vmatpush.msra.mxu0 0.0
    %60 = vmatpush.msra.mxu0 0.0
    %61 = vmatpush.msra.mxu0 0.0
    %62 = vmatpush.msra.mxu0 0.0
    %63 = vmatpush.msra.mxu0 0.0
    %64 = vmatpush.msra.mxu0 %v28
    %65 = vmatmul.f32.gmra.mxu0 %v47
    %v66 = vpop.f32.mrf.mxu0
    %v67 = vadd.f32 0.0, %v66
    %68 = vdwg.mxu0
    %v69 = vmax.f32 %v67, 0.0
    %70 = vmatpush.msra.mxu0 %v44
    %71 = vmatpush.msra.mxu0 %v43
    %72 = vmatpush.msra.mxu0 %v42
    %73 = vmatpush.msra.mxu0 %v41
    %74 = vmatpush.msra.mxu0 %v40
    %75 = vmatpush.msra.mxu0 %v39
    %76 = vmatpush.msra.mxu0 %v38
    %77 = vmatpush.msra.mxu0 %v37
    %78 = vmatpush.msra.mxu0 %v36
    %79 = vmatpush.msra.mxu0 %v35
    %80 = vmatpush.msra.mxu0 %v34
    %81 = vmatpush.msra.mxu0 %v33
    %82 = vmatpush.msra.mxu0 %v32
    %83 = vmatpush.msra.mxu0 %v31
    %84 = vmatpush.msra.mxu0 %v30
    %85 = vmatpush.msra.mxu0 %v29
    %86 = vmatmul.f32.gmra.mxu0 %v69
    %v87 = vpop.f32.mrf.mxu0
    %v88 = vadd.f32 0.0, %v87
    %89 = vdwg.mxu0
    %v90 = vlaneseq
    %v91 = vand.u32 %v90, 127
    %vm92 = vcmp.lt.s32.totalorder %v91, 2
    %v93 = vsel %vm92, %v88, -1e+30
    %94 = vst.msk [vmem:[%s2] sm:$0xff] %vm45, %v93
    // Predicated region
    $region14: #{q_net_forward.1} parent=1 // pred_check
      _
    $region15: #{q_net_forward.1} parent=1 // pred_check_branch
      %96 = sbr.rel (0) target = $region17
    $region16: #{q_net_forward.1} parent=1 // pred_region
      _
    $region17: #{q_net_forward.1} parent=1 // pred_fallthru
      _
    // Predicated region
    $region18: #{q_net_forward.1} parent=1 // pred_check
      _
    $region19: #{q_net_forward.1} parent=1 // pred_check_branch
      %98 = sbr.rel (0) target = $region21
    $region20: #{q_net_forward.1} parent=1 // pred_region
      _
    $region21: #{q_net_forward.1} parent=1 // pred_fallthru
      _
    %99 = vsyncpa [#allocation3], 1

</llo_original>
